<compile_context>
chip_gen: v5e
topology: v5e:2x2
jax: 0.10.0
libtpu: 0.0.40
codegen_flags: <defaults>
</compile_context>

<pallas_src>
import math
import functools

import numpy as np
import jax
import jax.numpy as jnp
from jax.experimental import pallas as pl
from jax.experimental.pallas import tpu as pltpu


# ----------------------------------------------------------------------------
# Tile-size helper: largest multiple of `step` that is <= pref and divides dim
# (falls back to the full dim, which is always a legal block shape).
# ----------------------------------------------------------------------------
def _pick_tile(dim, pref, step):
    if dim <= pref:
        return dim
    t = (pref // step) * step
    while t >= step:
        if dim % t == 0:
            return t
        t -= step
    return dim


# ----------------------------------------------------------------------------
# Tiled linear (matmul + bias) kernel -- qkv projection and output projection.
# ----------------------------------------------------------------------------
def _linear_kernel(x_ref, w_ref, b_ref, o_ref, acc_ref):
    @pl.when(pl.program_id(2) == 0)
    def _init():
        acc_ref[...] = jnp.zeros_like(acc_ref)

    acc_ref[...] += jnp.dot(x_ref[...], w_ref[...],
                            preferred_element_type=jnp.float32)

    @pl.when(pl.program_id(2) == pl.num_programs(2) - 1)
    def _finalize():
        o_ref[...] = (acc_ref[...] + b_ref[...]).astype(o_ref.dtype)


def linear(x, w, b, *, tm_pref=512, tn_pref=512, tk_pref=512):
    """x: (M, K), w: (K, N), b: (1, N) -> (M, N)."""
    M, K = x.shape
    N = w.shape[1]
    tm = _pick_tile(M, tm_pref, 8)
    tn = _pick_tile(N, tn_pref, 128)
    tk = _pick_tile(K, tk_pref, 128)
    grid = (M // tm, N // tn, K // tk)
    return pl.pallas_call(
        _linear_kernel,
        grid=grid,
        in_specs=[
            pl.BlockSpec((tm, tk), lambda i, j, k: (i, k)),
            pl.BlockSpec((tk, tn), lambda i, j, k: (k, j)),
            pl.BlockSpec((1, tn), lambda i, j, k: (0, j)),
        ],
        out_specs=pl.BlockSpec((tm, tn), lambda i, j, k: (i, j)),
        out_shape=jax.ShapeDtypeStruct((M, N), x.dtype),
        scratch_shapes=[pltpu.VMEM((tm, tn), jnp.float32)],
        compiler_params=pltpu.CompilerParams(
            dimension_semantics=("parallel", "parallel", "arbitrary"),
            vmem_limit_bytes=32 * 1024 * 1024),
    )(x, w, b)


# ----------------------------------------------------------------------------
# One-shot QK preprocessing: RMSNorm + RoPE (+ sm_scale folded into Q).
# Runs once over the data so the flash kernel below is pure SDPA.
# RoPE is expressed as  out = c1 * x + c2 * pair_swap(x), with pair_swap done
# by a tiny DxD permutation matmul (robust for any head_dim, amortized once).
# ----------------------------------------------------------------------------
def _qk_prep_kernel(q_ref, k_ref, qs_ref, ks_ref, c1_ref, c2_ref, swap_ref,
                    qr_ref, kr_ref, *, sm_scale):
    c1 = c1_ref[...]                      # (tl, D) f32
    c2 = c2_ref[...]
    swap = swap_ref[...]                  # (D, D) pair-swap permutation

    def norm_rope(t, scale, post):        # t: (tl, D); scale: (1, D)
        t = t.astype(jnp.float32)
        rrms = jax.lax.rsqrt(jnp.mean(t * t, axis=-1, keepdims=True) + 1e-6)
        t = t * rrms * scale
        sw = jnp.dot(t, swap, preferred_element_type=jnp.float32)
        return (c1 * t + c2 * sw) * post

    qr_ref[0, 0] = norm_rope(q_ref[0, 0], qs_ref[...], sm_scale).astype(qr_ref.dtype)
    kr_ref[0, 0] = norm_rope(k_ref[0, 0], ks_ref[...], 1.0).astype(kr_ref.dtype)


def qk_norm_rope(q, k, q_scale, k_scale, rope_c1, rope_c2, swap_mat,
                 *, sm_scale, tl_pref=512):
    """q,k: (B, H, L, D); scales: (1, D); rope_c1/c2: (L, D); swap: (D, D)."""
    B, H, L, D = q.shape
    tl = _pick_tile(L, tl_pref, 8)
    grid = (B, H, L // tl)

    qk_spec = pl.BlockSpec((1, 1, tl, D), lambda b, h, l: (b, h, l, 0))
    scale_spec = pl.BlockSpec((1, D), lambda b, h, l: (0, 0))
    rope_spec = pl.BlockSpec((tl, D), lambda b, h, l: (l, 0))
    swap_spec = pl.BlockSpec((D, D), lambda b, h, l: (0, 0))
    out_sds = jax.ShapeDtypeStruct((B, H, L, D), q.dtype)

    kernel = functools.partial(_qk_prep_kernel, sm_scale=sm_scale)
    return pl.pallas_call(
        kernel,
        grid=grid,
        in_specs=[qk_spec, qk_spec, scale_spec, scale_spec,
                  rope_spec, rope_spec, swap_spec],
        out_specs=[qk_spec, qk_spec],
        out_shape=(out_sds, out_sds),
        compiler_params=pltpu.CompilerParams(
            dimension_semantics=("parallel", "parallel", "parallel"),
            vmem_limit_bytes=32 * 1024 * 1024),
    )(q, k, q_scale, k_scale, rope_c1, rope_c2, swap_mat)


# ----------------------------------------------------------------------------
# Pure-SDPA flash attention.  Grid = (B, H, L//tq, L//tkv); kv is the
# (arbitrary) reduction axis.  Q already carries the softmax scale.
# ----------------------------------------------------------------------------
def _flash_kernel(q_ref, k_ref, v_ref, o_ref, m_ref, l_ref, acc_ref):
    ki = pl.program_id(3)

    @pl.when(ki == 0)
    def _init():
        m_ref[...] = jnp.full_like(m_ref, -jnp.inf)
        l_ref[...] = jnp.zeros_like(l_ref)
        acc_ref[...] = jnp.zeros_like(acc_ref)

    q = q_ref[0, 0]                                   # (tq, D), pre-scaled
    k = k_ref[0, 0]                                   # (tkv, D)
    s = jax.lax.dot_general(q, k, (((1,), (1,)), ((), ())),
                            preferred_element_type=jnp.float32)   # (tq, tkv)

    m_prev = m_ref[...]                               # (tq, 128), lane-uniform
    m_new = jnp.maximum(m_prev, jnp.max(s, axis=-1, keepdims=True))
    alpha = jnp.exp(m_prev - m_new)                   # (tq, 128)
    p = jnp.exp(s - m_new[:, 0:1])                    # (tq, tkv)
    l_ref[...] = alpha * l_ref[...] + jnp.sum(p, axis=-1, keepdims=True)
    pv = jnp.dot(p.astype(v_ref.dtype), v_ref[0, 0],
                 preferred_element_type=jnp.float32)  # (tq, D)
    acc_ref[...] = alpha[:, 0:1] * acc_ref[...] + pv
    m_ref[...] = m_new

    @pl.when(ki == pl.num_programs(3) - 1)
    def _finalize():
        inv_l = pl.reciprocal(l_ref[...], approx=False)   # exact reciprocal
        out = acc_ref[...] * inv_l[:, 0:1]
        o_ref[...] = out.astype(o_ref.dtype).reshape(o_ref.shape)


def flash_attention(q, k, v, *, tq_pref=256, tkv_pref=256):
    """q,k,v: (B, H, L, D) (already normed/roped/scaled).

    Returns (B, L, H*D) lane-dense when D % 128 == 0, otherwise (B, H, L, D).
    """
    B, H, L, D = q.shape
    tq = _pick_tile(L, tq_pref, 8)
    tkv = _pick_tile(L, tkv_pref, 8)
    grid = (B, H, L // tq, L // tkv)

    q_spec = pl.BlockSpec((1, 1, tq, D), lambda b, h, qi, ki: (b, h, qi, 0))
    kv_spec = pl.BlockSpec((1, 1, tkv, D), lambda b, h, qi, ki: (b, h, ki, 0))

    if D % 128 == 0:
        # Lane-dense direct (B, L, H*D) output: per-head D-wide column block is
        # 128-aligned, so no post-attention transpose / HBM round trip.
        out_shape = jax.ShapeDtypeStruct((B, L, H * D), q.dtype)
        out_spec = pl.BlockSpec((1, tq, D), lambda b, h, qi, ki: (b, qi, h))
    else:
        out_shape = jax.ShapeDtypeStruct((B, H, L, D), q.dtype)
        out_spec = pl.BlockSpec((1, 1, tq, D), lambda b, h, qi, ki: (b, h, qi, 0))

    return pl.pallas_call(
        _flash_kernel,
        grid=grid,
        in_specs=[q_spec, kv_spec, kv_spec],
        out_specs=out_spec,
        out_shape=out_shape,
        scratch_shapes=[
            pltpu.VMEM((tq, 128), jnp.float32),   # running max m (lane-dense)
            pltpu.VMEM((tq, 128), jnp.float32),   # running denom l (lane-dense)
            pltpu.VMEM((tq, D), jnp.float32),     # output accumulator
        ],
        compiler_params=pltpu.CompilerParams(
            dimension_semantics=("parallel", "parallel", "parallel",
                                 "arbitrary"),
            vmem_limit_bytes=32 * 1024 * 1024),   # v7x-safe budget
    )(q, k, v)


# ----------------------------------------------------------------------------
# Full SelfAttention forward (glue in plain JAX, hot paths in Pallas).
# ----------------------------------------------------------------------------
def self_attention_forward(x, w_qkv, b_qkv, w_proj, b_proj,
                           q_scale, k_scale, freqs_cis, num_heads):
    B, L, dim = x.shape
    H = num_heads
    D = dim // H
    sm_scale = 1.0 / math.sqrt(D)

    qkv = linear(x.reshape(B * L, dim), w_qkv, b_qkv)            # (B*L, 3*dim)
    # TODO(synk): feed q/k/v blocks straight from the (B, L, 3, H, D) GEMM
    # output inside the prep/flash kernels (would save this relayout's HBM
    # round trip); blocked by the (8,128) sublane/lane block rule when
    # head_dim < 128, which forces a head-major layout needing a cross-sublane
    # relayout somewhere.
    qkv = qkv.reshape(B, L, 3, H, D)
    qkv = jnp.transpose(qkv, (2, 0, 3, 1, 4))                    # (3, B, H, L, D)
    q, k, v = qkv[0], qkv[1], qkv[2]

    # RoPE coefficients: out = c1 * x + c2 * pair_swap(x)
    fc = freqs_cis.reshape(L, D // 2, 2, 2).astype(jnp.float32)
    rope_c1 = jnp.stack([fc[..., 0, 0], fc[..., 1, 1]], axis=-1).reshape(L, D)
    rope_c2 = jnp.stack([fc[..., 0, 1], fc[..., 1, 0]], axis=-1).reshape(L, D)
    swap_mat = jax.nn.one_hot(jnp.arange(D) ^ 1, D, dtype=jnp.float32)

    # One-shot QK RMSNorm + RoPE (sm_scale folded into Q); flash is pure SDPA.
    qr, kr = qk_norm_rope(q, k, q_scale, k_scale, rope_c1, rope_c2, swap_mat,
                          sm_scale=sm_scale)

    o = flash_attention(qr, kr, v)
    if o.ndim == 4:                                              # (B, H, L, D)
        # TODO(synk): head_dim < 128 -> per-head lane-dense output blocks on a
        # (B, L, H*D) array are not 128-aligned, so the head merge stays an XLA
        # transpose here (the D % 128 == 0 path writes lane-dense directly).
        o = jnp.transpose(o, (0, 2, 1, 3)).reshape(B * L, dim)
    else:                                                        # (B, L, H*D)
        o = o.reshape(B * L, dim)

    out = linear(o, w_proj, b_proj)
    return out.reshape(B, L, dim)


# ----------------------------------------------------------------------------
# Pure-JAX reference (mirrors the PyTorch module exactly) for validation.
# ----------------------------------------------------------------------------
def reference(x, w_qkv, b_qkv, w_proj, b_proj, q_scale, k_scale, freqs_cis, H):
    B, L, dim = x.shape
    D = dim // H
    qkv = x @ w_qkv + b_qkv
    qkv = qkv.reshape(B, L, 3, H, D).transpose(2, 0, 3, 1, 4)
    q, k, v = qkv[0], qkv[1], qkv[2]

    def rms(t, scale):
        rrms = jax.lax.rsqrt(jnp.mean(t.astype(jnp.float32) ** 2, -1,
                                      keepdims=True) + 1e-6)
        return t * rrms * scale.reshape(-1)

    q = rms(q, q_scale)
    k = rms(k, k_scale)

    xq_ = q.reshape(B, H, L, D // 2, 1, 2)
    xk_ = k.reshape(B, H, L, D // 2, 1, 2)
    q = (freqs_cis[..., 0] * xq_[..., 0] +
         freqs_cis[..., 1] * xq_[..., 1]).reshape(B, H, L, D)
    k = (freqs_cis[..., 0] * xk_[..., 0] +
         freqs_cis[..., 1] * xk_[..., 1]).reshape(B, H, L, D)

    s = jnp.einsum('bhld,bhmd->bhlm', q, k) / math.sqrt(D)
    p = jax.nn.softmax(s, axis=-1)
    o = jnp.einsum('bhlm,bhmd->bhld', p, v)
    o = o.transpose(0, 2, 1, 3).reshape(B, L, dim)
    return o @ w_proj + b_proj


if __name__ == "__main__":
    B, L, dim, H = 2, 8, 32, 4
    D = dim // H

    key = jax.random.PRNGKey(0)
    kx, kw1, kw2, kb2, kqs, kks = jax.random.split(key, 6)
    x = jax.random.normal(kx, (B, L, dim), jnp.float32)
    w_qkv = jax.random.normal(kw1, (dim, 3 * dim), jnp.float32) * 0.1
    b_qkv = jnp.zeros((1, 3 * dim), jnp.float32)          # qkv_bias=False
    w_proj = jax.random.normal(kw2, (dim, dim), jnp.float32) * 0.1
    b_proj = jax.random.normal(kb2, (1, dim), jnp.float32) * 0.1
    q_scale = 1.0 + 0.1 * jax.random.normal(kqs, (1, D), jnp.float32)
    k_scale = 1.0 + 0.1 * jax.random.normal(kks, (1, D), jnp.float32)

    # RoPE rotation matrices, flux convention: (1, 1, L, D//2, 2, 2)
    pos = jnp.arange(L, dtype=jnp.float32)[:, None]
    inv_freq = 1.0 / (10000.0 ** (jnp.arange(D // 2, dtype=jnp.float32) / (D // 2)))
    ang = pos * inv_freq[None, :]                          # (L, D//2)
    cos, sin = jnp.cos(ang), jnp.sin(ang)
    fc = jnp.stack([jnp.stack([cos, -sin], -1),
                    jnp.stack([sin, cos], -1)], axis=-2)   # (L, D//2, 2, 2)
    freqs_cis = fc[None, None]                             # (1, 1, L, D//2, 2, 2)

    out = self_attention_forward(x, w_qkv, b_qkv, w_proj, b_proj,
                                 q_scale, k_scale, freqs_cis, H)
    out = jax.block_until_ready(out)

    ref = reference(x, w_qkv, b_qkv, w_proj, b_proj, q_scale, k_scale,
                    freqs_cis, H)
    np.testing.assert_allclose(np.asarray(out), np.asarray(ref),
                               rtol=1e-3, atol=1e-3)
    print("KERNEL_OK")
</pallas_src>

<mosaic_0001>
module attributes {stable_mosaic.version = 11 : i64} {
  func.func @_linear_kernel(%arg0: i32, %arg1: i32, %arg2: i32, %arg3: memref<16x32xf32, #tpu.memory_space<vmem>>, %arg4: memref<32x96xf32, #tpu.memory_space<vmem>>, %arg5: memref<1x96xf32, #tpu.memory_space<vmem>>, %arg6: memref<16x96xf32, #tpu.memory_space<vmem>>, %arg7: memref<16x96xf32, #tpu.memory_space<vmem>>) attributes {dimension_semantics = [#tpu.dimension_semantics<parallel>, #tpu.dimension_semantics<parallel>, #tpu.dimension_semantics<arbitrary>], iteration_bounds = array<i64: 1, 1, 1>, scalar_prefetch = 0 : i64, scratch_operands = 1 : i64, tpu.core_type = #tpu.core_type<tc>, window_params = [{transform_indices = @transform_0, window_bounds = array<i64: 16, 32>}, {transform_indices = @transform_1, window_bounds = array<i64: 32, 96>}, {transform_indices = @transform_2, window_bounds = array<i64: 1, 96>}, {transform_indices = @transform_3, window_bounds = array<i64: 16, 96>}]} {
    %c0_i32 = arith.constant 0 : i32
    %0 = arith.cmpi eq, %arg2, %c0_i32 : i32
    %1 = arith.extui %0 : i1 to i32
    %c0_i32_0 = arith.constant 0 : i32
    %2 = arith.cmpi ne, %1, %c0_i32_0 : i32
    scf.if %2 {
      %cst_10 = arith.constant 0.000000e+00 : f32
      %12 = vector.broadcast %cst_10 : f32 to vector<16x96xf32>
      %c0_11 = arith.constant 0 : index
      %c0_12 = arith.constant 0 : index
      %13 = vector.load %arg7[%c0_11, %c0_12] : memref<16x96xf32, #tpu.memory_space<vmem>>, vector<16x96xf32>
      tpu.vector_store %arg7[%c0_11, %c0_12], %12 {strides = array<i32>} : memref<16x96xf32, #tpu.memory_space<vmem>>, vector<16x96xf32>,
    } else {
    }
    %c0 = arith.constant 0 : index
    %c0_1 = arith.constant 0 : index
    %3 = vector.load %arg7[%c0, %c0_1] : memref<16x96xf32, #tpu.memory_space<vmem>>, vector<16x96xf32>
    %c0_2 = arith.constant 0 : index
    %c0_3 = arith.constant 0 : index
    %4 = vector.load %arg3[%c0_2, %c0_3] : memref<16x32xf32, #tpu.memory_space<vmem>>, vector<16x32xf32>
    %c0_4 = arith.constant 0 : index
    %c0_5 = arith.constant 0 : index
    %5 = vector.load %arg4[%c0_4, %c0_5] : memref<32x96xf32, #tpu.memory_space<vmem>>, vector<32x96xf32>
    %cst = arith.constant dense<0.000000e+00> : vector<16x96xf32>
    %6 = tpu.matmul %4, %5, %cst {dimension_numbers = #tpu.dot_dimension_numbers<[1], [0], [0], [1], [0, 0, 1, 1], [], []>} : vector<16x32xf32>, vector<32x96xf32>, vector<16x96xf32> -> vector<16x96xf32>
    %7 = arith.addf %3, %6 : vector<16x96xf32>
    %c0_6 = arith.constant 0 : index
    %c0_7 = arith.constant 0 : index
    %8 = vector.load %arg7[%c0_6, %c0_7] : memref<16x96xf32, #tpu.memory_space<vmem>>, vector<16x96xf32>
    tpu.vector_store %arg7[%c0_6, %c0_7], %7 {strides = array<i32>} : memref<16x96xf32, #tpu.memory_space<vmem>>, vector<16x96xf32>,
    %c0_i32_8 = arith.constant 0 : i32
    %9 = arith.cmpi eq, %arg2, %c0_i32_8 : i32
    %10 = arith.extui %9 : i1 to i32
    %c0_i32_9 = arith.constant 0 : i32
    %11 = arith.cmpi ne, %10, %c0_i32_9 : i32
    scf.if %11 {
      %c0_10 = arith.constant 0 : index
      %c0_11 = arith.constant 0 : index
      %12 = vector.load %arg7[%c0_10, %c0_11] : memref<16x96xf32, #tpu.memory_space<vmem>>, vector<16x96xf32>
      %c0_12 = arith.constant 0 : index
      %c0_13 = arith.constant 0 : index
      %13 = vector.load %arg5[%c0_12, %c0_13] : memref<1x96xf32, #tpu.memory_space<vmem>>, vector<1x96xf32>
      %14 = vector.broadcast %13 : vector<1x96xf32> to vector<16x96xf32>
      %15 = arith.addf %12, %14 : vector<16x96xf32>
      %c0_14 = arith.constant 0 : index
      %c0_15 = arith.constant 0 : index
      %16 = vector.load %arg6[%c0_14, %c0_15] : memref<16x96xf32, #tpu.memory_space<vmem>>, vector<16x96xf32>
      tpu.vector_store %arg6[%c0_14, %c0_15], %15 {strides = array<i32>} : memref<16x96xf32, #tpu.memory_space<vmem>>, vector<16x96xf32>,
    } else {
    }
    return
  }
  func.func @transform_0(%arg0: i32, %arg1: i32, %arg2: i32) -> (i32, i32) {
    %c0_i32 = arith.constant 0 : i32
    return %arg0, %arg2 : i32, i32
  }
  func.func @transform_1(%arg0: i32, %arg1: i32, %arg2: i32) -> (i32, i32) {
    %c0_i32 = arith.constant 0 : i32
    return %arg2, %arg1 : i32, i32
  }
  func.func @transform_2(%arg0: i32, %arg1: i32, %arg2: i32) -> (i32, i32) {
    %c0_i32 = arith.constant 0 : i32
    %c0_i32_0 = arith.constant 0 : i32
    return %c0_i32, %arg1 : i32, i32
  }
  func.func @transform_3(%arg0: i32, %arg1: i32, %arg2: i32) -> (i32, i32) {
    %c0_i32 = arith.constant 0 : i32
    return %arg0, %arg1 : i32, i32
  }
}

</mosaic_0001>

<llo_original>
// kernel: tpu_custom_call.1
$region0: #{tpu_custom_call.1}
  #allocation0 [shape = 'u32[]', space=smem, size = 0x4, offset = 0x4, fixed_abs, tag = 'smem constant byte address 0x4 - core index']
  #allocation1 [shape = 'u32[72,128]{1,0:T(1,128)}', space=vmem, size = 0x9000, scoped, tag = 'internal scratch']
  #allocation2 [shape = 'f32[16,96]{1,0:T(8,128)}', space=vmem, size = 0x2000, scoped, tag = 'scratch operand']
  %s0 = inlined_call_operand.hbm [shape: f32[16,32], index: 0, kind: input, shape index: {}]
  %s1 = inlined_call_operand.hbm [shape: f32[32,96], index: 1, kind: input, shape index: {}]
  %s2 = inlined_call_operand.vmem [shape: f32[1,96], index: 2, kind: input, shape index: {}]
  %s3 = inlined_call_operand.hbm [shape: f32[16,96], index: 3, kind: output, shape index: {}]
  %s4 = sld [smem:[#allocation0]]
  $region38: #{tpu_custom_call.1} parent=0
    _
  %s6 = ssub.s32 1, %s4
  %s7 = scalar_select 0, %s6, %s4
  $region1: #{tpu_custom_call.1} parent=0
    #allocation3 [shape = 'u8[8192]{0}', space=vmem, size = 0x2000, scoped, tag = 'input window, operand 0, single buffered']
    #allocation4 [shape = 's32[1]{0}', space=sflag, size = 0x4, scoped, tag = 'scoped memory for tpu_custom_call.1']
    #allocation5 [shape = 's32[1]{0}', space=sflag, size = 0x4, scoped, tag = 'scoped memory for tpu_custom_call.1']
    #allocation6 [shape = 'u8[16384]{0}', space=vmem, size = 0x4000, scoped, tag = 'input window, operand 1, single buffered']
    #allocation7 [shape = 's32[1]{0}', space=sflag, size = 0x4, scoped, tag = 'scoped memory for tpu_custom_call.1']
    #allocation8 [shape = 'u8[8192]{0}', space=vmem, size = 0x2000, scoped, tag = 'output window, operand 0, single buffered']
    %8 = vsyncpa [#allocation4], 0
    %9 = vsyncpa [#allocation7], 0
    %10 = vsyncpa [#allocation5], 0
    // Predicated region
    $region2: #{tpu_custom_call.1} parent=1 // pred_check
      _
    $region3: #{tpu_custom_call.1} parent=1 // pred_check_branch
      %12 = sbr.rel (0) target = $region5
    $region4: #{tpu_custom_call.1} parent=1 // pred_region
      %14 = vsyncadd [#allocation4], 0
      %s15 = sshll.u32 %s0, 4
      %s16 = int_to_ptr.hbm [resolvable:$true] %s15
      %s17 = sshll.u32 [#allocation3], 4
      %s18 = int_to_ptr.vmem [resolvable:$true] %s17
      %23 = dma.hbm_to_vmem [thread:$0]  %s16, 256, %s18, [#allocation4], 128, 128, 8
    $region5: #{tpu_custom_call.1} parent=1 // pred_fallthru
      _
    // Predicated region
    $region6: #{tpu_custom_call.1} parent=1 // pred_check
      _
    $region7: #{tpu_custom_call.1} parent=1 // pred_check_branch
      %25 = sbr.rel (0) target = $region9
    $region8: #{tpu_custom_call.1} parent=1 // pred_region
      %27 = vsyncadd [#allocation7], 0
      %s28 = sshll.u32 %s1, 4
      %s29 = int_to_ptr.hbm [resolvable:$true] %s28
      %s30 = sshll.u32 [#allocation6], 4
      %s31 = int_to_ptr.vmem [resolvable:$true] %s30
      %36 = dma.hbm_to_vmem [thread:$0]  %s29, 512, %s31, [#allocation7], 128, 128, 8
    $region9: #{tpu_custom_call.1} parent=1 // pred_fallthru
      _
    // Predicated region
    $region10: #{tpu_custom_call.1} parent=1 // pred_check
      _
    $region11: #{tpu_custom_call.1} parent=1 // pred_check_branch
      %38 = sbr.rel (0) target = $region13
    $region12: #{tpu_custom_call.1} parent=1 // pred_region
      _
    $region13: #{tpu_custom_call.1} parent=1 // pred_fallthru
      _
    // Predicated region
    $region14: #{tpu_custom_call.1} parent=1 // pred_check
      _
    $region15: #{tpu_custom_call.1} parent=1 // pred_check_branch
      %40 = sbr.rel (0) target = $region17
    $region16: #{tpu_custom_call.1} parent=1 // pred_region
      %42 = dma.done [#allocation4], 256
    $region17: #{tpu_custom_call.1} parent=1 // pred_fallthru
      _
    // Predicated region
    $region18: #{tpu_custom_call.1} parent=1 // pred_check
      _
    $region19: #{tpu_custom_call.1} parent=1 // pred_check_branch
      %44 = sbr.rel (0) target = $region21
    $region20: #{tpu_custom_call.1} parent=1 // pred_region
      %46 = dma.done [#allocation7], 512
    $region21: #{tpu_custom_call.1} parent=1 // pred_fallthru
      _
    %p47 = scmp.eq.s32.totalorder 0, 0
    // Predicated region
    $region22: #{tpu_custom_call.1} parent=1 // pred_check
      %p48 = pneg %p47
    $region23: #{tpu_custom_call.1} parent=1 // pred_check_branch
      %50 = sbr.rel (%p48) target = $region25
    $region24: #{tpu_custom_call.1} parent=1 // pred_region
      %vm51 = vcmask 785408
      %52 = vst.msk [vmem:[#allocation2] sm:$0xff] %vm51, 0.0
      %53 = vst.msk [vmem:[#allocation2 + $0x8] sm:$0xff] %vm51, 0.0
    $region25: #{tpu_custom_call.1} parent=1 // pred_fallthru
      _
    %v54 = vld [vmem:[#allocation2] sm:$0xff]
    %v55 = vld [vmem:[#allocation2 + $0x8] sm:$0xff]
    %v56 = vld [vmem:[#allocation3] sm:$0xff]
    %v57 = vld [vmem:[#allocation3 + $0x8] sm:$0xff]
    %v58 = vld [vmem:[#allocation6] sm:$0xff]
    %v59 = vld [vmem:[#allocation6 + $0x8] sm:$0xff]
    %v60 = vld [vmem:[#allocation6 + $0x10] sm:$0xff]
    %v61 = vld [vmem:[#allocation6 + $0x18] sm:$0xff]
    %vm62 = vcmask 261120
    %v64 = vsel %vm62, %v56, 0
    %v67 = vsel %vm62, %v57, 0
    %69 = vmatpush.msra.mxu0 0.0
    %70 = vmatpush.msra.mxu0 0.0
    %71 = vmatpush.msra.mxu0 0.0
    %72 = vmatpush.msra.mxu0 0.0
    %73 = vmatpush.msra.mxu0 0.0
    %74 = vmatpush.msra.mxu0 0.0
    %75 = vmatpush.msra.mxu0 0.0
    %76 = vmatpush.msra.mxu0 0.0
    %77 = vmatpush.msra.mxu0 0.0
    %78 = vmatpush.msra.mxu0 0.0
    %79 = vmatpush.msra.mxu0 0.0
    %80 = vmatpush.msra.mxu0 0.0
    %81 = vmatpush.msra.mxu0 %v61
    %82 = vmatpush.msra.mxu0 %v60
    %83 = vmatpush.msra.mxu0 %v59
    %84 = vmatpush.msra.mxu0 %v58
    %85 = vmatmul.f32.gmra.mxu0 %v64
    %v86 = vpop.f32.mrf.mxu0
    %v87 = vadd.f32 0.0, %v86
    %88 = vmatmul.f32.gmra.mxu0 %v67
    %v89 = vpop.f32.mrf.mxu0
    %v90 = vadd.f32 0.0, %v89
    %91 = vdwg.mxu0
    %v92 = vadd.f32 %v54, %v87
    %v93 = vadd.f32 %v55, %v90
    %vm94 = vcmask 785408
    %95 = vst.msk [vmem:[#allocation2] sm:$0xff] %vm94, %v92
    %96 = vst.msk [vmem:[#allocation2 + $0x8] sm:$0xff] %vm94, %v93
    // Predicated region
    $region26: #{tpu_custom_call.1} parent=1 // pred_check
      %p97 = pneg %p47
    $region27: #{tpu_custom_call.1} parent=1 // pred_check_branch
      %99 = sbr.rel (%p97) target = $region29
    $region28: #{tpu_custom_call.1} parent=1 // pred_region
      %v100 = vld [vmem:[#allocation2] sm:$0xff]
      %v101 = vld [vmem:[#allocation2 + $0x8] sm:$0xff]
      %v102 = vld [vmem:[%s2] sm:$0x1]
      %v104 = vperm.slane %v102, 0
      %v106 = vadd.f32 %v100, %v104
      %v107 = vadd.f32 %v101, %v104
      %108 = vst.msk [vmem:[#allocation8] sm:$0xff] %vm94, %v106
      %109 = vst.msk [vmem:[#allocation8 + $0x8] sm:$0xff] %vm94, %v107
    $region29: #{tpu_custom_call.1} parent=1 // pred_fallthru
      _
    // Predicated region
    $region30: #{tpu_custom_call.1} parent=1 // pred_check
      _
    $region31: #{tpu_custom_call.1} parent=1 // pred_check_branch
      %111 = sbr.rel (0) target = $region33
    $region32: #{tpu_custom_call.1} parent=1 // pred_region
      %113 = vsyncadd [#allocation5], 0
      %s114 = sshll.u32 [#allocation8], 4
      %s115 = int_to_ptr.vmem [resolvable:$true] %s114
      %s116 = sshll.u32 %s3, 4
      %s117 = int_to_ptr.hbm [resolvable:$true] %s116
      %122 = dma.vmem_to_hbm [thread:$0]  %s115, 256, %s117, [#allocation5], 128, 128, 8
    $region33: #{tpu_custom_call.1} parent=1 // pred_fallthru
      _
    // Predicated region
    $region34: #{tpu_custom_call.1} parent=1 // pred_check
      _
    $region35: #{tpu_custom_call.1} parent=1 // pred_check_branch
      %124 = sbr.rel (0) target = $region37
    $region36: #{tpu_custom_call.1} parent=1 // pred_region
      %126 = dma.done [#allocation5], 256
    $region37: #{tpu_custom_call.1} parent=1 // pred_fallthru
      _
    %127 = vsyncpa [#allocation4], 1
    %128 = vsyncpa [#allocation7], 1
    %129 = vsyncpa [#allocation5], 1

</llo_original>
